<compile_context>
chip_gen: v6e
topology: v6e:2x2x1
jax: 0.10.0
libtpu: 0.0.40
codegen_flags: <defaults>
</compile_context>

<pallas_src>
import functools

import jax
import jax.numpy as jnp
from jax.experimental import pallas as pl
from jax.experimental.pallas import tpu as pltpu


def _stage_cost_kernel(coef_ref, in_ref, out_ref, *, n):
    # coef_ref: (1,)          f32 in SMEM, holds -0.5 / std**2
    # in_ref:   (block_b, F)  input tile in VMEM
    # out_ref:  (1, block_b)  lane-dense output tile in VMEM
    xf = in_ref[:, :n].astype(jnp.float32)       # static slice of state columns
    s = jnp.sum(xf * xf, axis=1)                 # (block_b,) cross-lane reduce (XLU)
    y = -jnp.exp(s * coef_ref[0])                # EUP exp on a lane-dense vector
    out_ref[...] = y[None, :].astype(out_ref.dtype)


def _pick_block_b(B, target=4096):
    """Largest 128-multiple divisor of B that is <= min(target, B // 2);
    falls back to the full batch for small / non-128-aligned B."""
    if B % 128 != 0 or B < 256:
        return B
    cand = min(target, B // 2)
    cand = max(128, (cand // 128) * 128)
    while B % cand != 0:
        cand -= 128
    return cand


def goal_conditioned_stage_cost(inp, n, m, std=0.5, block_b=None):
    """inp: [B, n+m] -> [B, 1]  (rank-2 case of the torch module)."""
    if inp.ndim != 2:
        raise ValueError(
            "goal_conditioned_stage_cost implements only the rank-2 case "
            "[B, n+m]; the torch module's axis=1 reduction means something "
            f"different for rank-{inp.ndim} inputs.")
    B, F = inp.shape
    assert F == n + m, f"expected last dim {n + m}, got {F}"

    if block_b is None:
        block_b = _pick_block_b(B)
    assert B % block_b == 0, (B, block_b)
    # (8,128) tiling: the (1, block_b) output block needs block_b to be a
    # multiple of 128 (or the full batch); that also covers the 8-row rule
    # for the (block_b, F) input block.
    assert block_b == B or block_b % 128 == 0, block_b

    coef = jnp.full((1,), -0.5 / (std * std), dtype=jnp.float32)
    kernel = functools.partial(_stage_cost_kernel, n=n)

    out_row = pl.pallas_call(
        kernel,
        out_shape=jax.ShapeDtypeStruct((1, B), inp.dtype),
        grid_spec=pltpu.PrefetchScalarGridSpec(
            num_scalar_prefetch=0,
            grid=(B // block_b,),
            in_specs=[
                pl.BlockSpec(memory_space=pltpu.MemorySpace.SMEM),   # coef scalar
                pl.BlockSpec((block_b, F), lambda i: (i, 0)),        # input tile
            ],
            out_specs=pl.BlockSpec((1, block_b), lambda i: (0, i)),  # lane-dense
        ),
        compiler_params=pltpu.CompilerParams(
            dimension_semantics=("parallel",)),
    )(coef, inp)
    return out_row.reshape(B, 1)


def _reference(inp, n, std=0.5):
    x = inp[..., :n]
    return -jnp.exp(-0.5 * jnp.sum(x ** 2, axis=1, keepdims=True) / std ** 2)


if __name__ == "__main__":
    n, m, std = 4, 2, 0.5
    key0, key1 = jax.random.split(jax.random.PRNGKey(0))

    # Small case matching the module's typical shapes (state dim 4, control 2).
    B0 = 8
    inp0 = jax.random.normal(key0, (B0, n + m), dtype=jnp.float32)
    out0 = jax.block_until_ready(goal_conditioned_stage_cost(inp0, n, m, std))
    ref0 = _reference(inp0, n, std)
    assert out0.shape == (B0, 1), out0.shape
    assert jnp.allclose(out0, ref0, atol=1e-6, rtol=1e-6)

    # Larger batch exercising the multi-step pipelined grid (block_b=128, 2 steps).
    B1 = 256
    inp1 = jax.random.normal(key1, (B1, n + m), dtype=jnp.float32)
    out1 = jax.block_until_ready(goal_conditioned_stage_cost(inp1, n, m, std))
    ref1 = _reference(inp1, n, std)
    assert out1.shape == (B1, 1), out1.shape
    assert jnp.allclose(out1, ref1, atol=1e-6, rtol=1e-6)

    print("KERNEL_OK")
</pallas_src>

<mosaic_0001>
module attributes {stable_mosaic.version = 11 : i64} {
  func.func @_stage_cost_kernel(%arg0: i32, %arg1: memref<1xf32, #tpu.memory_space<smem>>, %arg2: memref<8x6xf32, #tpu.memory_space<vmem>>, %arg3: memref<1x8xf32, #tpu.memory_space<vmem>>) attributes {dimension_semantics = [#tpu.dimension_semantics<parallel>], iteration_bounds = array<i64: 1>, scalar_prefetch = 0 : i64, scratch_operands = 0 : i64, tpu.core_type = #tpu.core_type<tc>, window_params = [{transform_indices = @transform_0, window_bounds = array<i64: 1>}, {transform_indices = @transform_1, window_bounds = array<i64: 8, 6>}, {transform_indices = @transform_2, window_bounds = array<i64: 1, 8>}]} {
    %c0 = arith.constant 0 : index
    %c0_0 = arith.constant 0 : index
    %0 = vector.load %arg2[%c0, %c0_0] : memref<8x6xf32, #tpu.memory_space<vmem>>, vector<8x4xf32>
    %1 = arith.mulf %0, %0 : vector<8x4xf32>
    %cst = arith.constant dense<0.000000e+00> : vector<8xf32>
    %2 = vector.multi_reduction <add>, %1, %cst [1] : vector<8x4xf32> to vector<8xf32>
    %c0_1 = arith.constant 0 : index
    %3 = memref.load %arg1[%c0_1] : memref<1xf32, #tpu.memory_space<smem>>
    %4 = vector.broadcast %3 : f32 to vector<8xf32>
    %5 = arith.mulf %2, %4 : vector<8xf32>
    %6 = math.exp %5 : vector<8xf32>
    %cst_2 = arith.constant 0.000000e+00 : f32
    %7 = vector.broadcast %cst_2 : f32 to vector<8xf32>
    %8 = arith.subf %7, %6 : vector<8xf32>
    %9 = vector.shape_cast %8 : vector<8xf32> to vector<1x8xf32>
    %c0_3 = arith.constant 0 : index
    %c0_4 = arith.constant 0 : index
    %10 = vector.load %arg3[%c0_3, %c0_4] : memref<1x8xf32, #tpu.memory_space<vmem>>, vector<1x8xf32>
    tpu.vector_store %arg3[%c0_3, %c0_4], %9 {strides = array<i32>} : memref<1x8xf32, #tpu.memory_space<vmem>>, vector<1x8xf32>,
    return
  }
  func.func @transform_0(%arg0: i32) -> i32 {
    %c0_i32 = arith.constant 0 : i32
    %c0_i32_0 = arith.constant 0 : i32
    return %c0_i32 : i32
  }
  func.func @transform_1(%arg0: i32) -> (i32, i32) {
    %c0_i32 = arith.constant 0 : i32
    %c0_i32_0 = arith.constant 0 : i32
    return %arg0, %c0_i32 : i32, i32
  }
  func.func @transform_2(%arg0: i32) -> (i32, i32) {
    %c0_i32 = arith.constant 0 : i32
    %c0_i32_0 = arith.constant 0 : i32
    return %c0_i32, %arg0 : i32, i32
  }
}

</mosaic_0001>

<llo_original>
// kernel: tpu_custom_call.1
$region0: #{tpu_custom_call.1}
  #allocation0 [shape = 'u32[]', space=smem, size = 0x4, offset = 0x4, fixed_abs, tag = 'smem constant byte address 0x4 - core index']
  #allocation1 [shape = 'u32[144,128]{1,0:T(1,128)}', space=vmem, size = 0x12000, scoped, tag = 'internal scratch']
  #allocation2 [shape = 'f32[1]{0:T(128)S(6)}', space=smem, size = 0x200, scoped, tag = 'scoped memory for tpu_custom_call.1']
  %s0 = inlined_call_operand.<no memory space> [shape: f32[1], index: 0, kind: input, shape index: {}]
  %s1 = inlined_call_operand.hbm [shape: f32[8,6], index: 1, kind: input, shape index: {}]
  %s2 = inlined_call_operand.hbm [shape: f32[1,8], index: 2, kind: output, shape index: {}]
  %s3 = sld [smem:[#allocation0]]
  $region22: #{tpu_custom_call.1} parent=0
    _
  %s5 = ssub.s32 1, %s3
  %s6 = scalar_select 0, %s5, %s3
  %7 = sst [smem:[#allocation2]] %s0
  $region1: #{tpu_custom_call.1} parent=0
    #allocation3 [shape = 'u8[4096]{0}', space=vmem, size = 0x1000, scoped, tag = 'input window, operand 1, single buffered']
    #allocation4 [shape = 's32[1]{0}', space=sflag, size = 0x4, scoped, tag = 'scoped memory for tpu_custom_call.1']
    #allocation5 [shape = 's32[1]{0}', space=sflag, size = 0x4, scoped, tag = 'scoped memory for tpu_custom_call.1']
    #allocation6 [shape = 'u8[512]{0}', space=vmem, size = 0x400, scoped, tag = 'output window, operand 0, single buffered']
    %8 = vsyncpa [#allocation4], 0
    %9 = vsyncpa [#allocation5], 0
    // Predicated region
    $region2: #{tpu_custom_call.1} parent=1 // pred_check
      _
    $region3: #{tpu_custom_call.1} parent=1 // pred_check_branch
      %11 = sbr.rel (0) target = $region5
    $region4: #{tpu_custom_call.1} parent=1 // pred_region
      _
    $region5: #{tpu_custom_call.1} parent=1 // pred_fallthru
      _
    // Predicated region
    $region6: #{tpu_custom_call.1} parent=1 // pred_check
      _
    $region7: #{tpu_custom_call.1} parent=1 // pred_check_branch
      %13 = sbr.rel (0) target = $region9
    $region8: #{tpu_custom_call.1} parent=1 // pred_region
      %s15 = ssub.s32 128, 128
      %16 = vsyncadd [#allocation4], %s15
      %s18 = sshll.u32 [#allocation3], 4
      %s19 = int_to_ptr.vmem [resolvable:$true] %s18
      %21 = dma.hbm_to_vmem [thread:$0]  %s1, 128, %s19, [#allocation4]
    $region9: #{tpu_custom_call.1} parent=1 // pred_fallthru
      _
    // Predicated region
    $region10: #{tpu_custom_call.1} parent=1 // pred_check
      _
    $region11: #{tpu_custom_call.1} parent=1 // pred_check_branch
      %23 = sbr.rel (0) target = $region13
    $region12: #{tpu_custom_call.1} parent=1 // pred_region
      %24 = dma.done [#allocation4], 128
    $region13: #{tpu_custom_call.1} parent=1 // pred_fallthru
      _
    %v25 = vld [vmem:[#allocation3] sm:$0xff]
    %v26 = vmul.f32 %v25, %v25
    %vm27 = vcmask 31744
    %v28 = vsel %vm27, %v26, 0.0
    %29 = vadd.xlane.f32.xlu0 %v28
    %v30 = vpop.xlane.xlu0 %29
    %s31 = sld [smem:[#allocation2]]
    %v32 = vstv %s31
    %v33 = vmul.f32 %v30, %v32
    %v34 = vmul.f32 %v33, 1.442695
    %v35 = vpow.pop %v34
    %v36 = vsub.f32 0.0, %v35
    %v38 = vlaneseq
    %v39 = vand.u32 %v38, 127
    %v40 = vlaneseq
    %v41 = vshrl.u32 %v40, 7
    %v42 = vsub.s32 %v39, %v41
    %v43 = vrot.slane %v36, %v42
    %vm45 = vcmask 57344
    %46 = vst.msk [vmem:[#allocation6] sm:$0x1] %vm45, %v43
    // Predicated region
    $region14: #{tpu_custom_call.1} parent=1 // pred_check
      _
    $region15: #{tpu_custom_call.1} parent=1 // pred_check_branch
      %48 = sbr.rel (0) target = $region17
    $region16: #{tpu_custom_call.1} parent=1 // pred_region
      %s50 = ssub.s32 16, 16
      %51 = vsyncadd [#allocation5], %s50
      %s53 = sshll.u32 [#allocation6], 4
      %s54 = int_to_ptr.vmem [resolvable:$true] %s53
      %56 = dma.vmem_to_hbm [thread:$0]  %s54, 16, %s2, [#allocation5]
    $region17: #{tpu_custom_call.1} parent=1 // pred_fallthru
      _
    // Predicated region
    $region18: #{tpu_custom_call.1} parent=1 // pred_check
      _
    $region19: #{tpu_custom_call.1} parent=1 // pred_check_branch
      %58 = sbr.rel (0) target = $region21
    $region20: #{tpu_custom_call.1} parent=1 // pred_region
      %59 = dma.done [#allocation5], 16
    $region21: #{tpu_custom_call.1} parent=1 // pred_fallthru
      _
    %60 = vsyncpa [#allocation4], 1
    %61 = vsyncpa [#allocation5], 1

</llo_original>
